<compile_context>
chip_gen: v6e
topology: v6e:2x2x1
jax: 0.10.0
libtpu: 0.0.40
codegen_flags: <defaults>
</compile_context>

<pallas_src>
import math

import jax
import jax.numpy as jnp
from jax.experimental import pallas as pl
from jax.experimental.pallas import tpu as pltpu


def _make_kernel(rho):
    rho = float(rho)

    def _kernel(buf_ref, out_ref):
        x = buf_ref[...]                       # (8, L) -- one vreg-sized load
        a   = x[0:1, :]                        # focal*(j_xy + t_xy), lane-packed
        az  = x[1:2, :]                        # j_z + t_z (dup for x/y lanes)
        gt  = x[2:3, :]                        # gt_xy - center_xy
        w2  = x[3:4, :]                        # (data_w * weight * conf)^2
        pri = x[4:5, :]                        # pre-weighted L2 priors
        ang = x[5:6, :]                        # sign*angle + 0.5*log(bend_w)

        # Perspective projection residual (one EUP recip + one Newton step).
        inv_z = pl.reciprocal(az, approx=True)
        inv_z = inv_z * (2.0 - az * inv_z)
        r = gt - a * inv_z
        rr = r * r

        # GMoF robust distance: rho * rr / (rr + rho).  Raw approx recip is
        # accurate enough here (denominator >= rho, saturating term).
        gmof = (rho * rr) * pl.reciprocal(rr + rho, approx=True)

        # All contributions into one vreg, one cross-lane reduction.
        contrib = w2 * gmof + pri * pri + jnp.exp(2.0 * ang)   # (1, L)
        out_ref[0, 0] = jnp.sum(contrib)

    return _kernel


def smplify_loss(joints, gt_joints, joint_conf, joint_weights,
                 betas, full_pose, left_hand_pose, right_hand_pose,
                 jaw_pose, expression, *,
                 rho, data_weight, shape_weight, bending_prior_weight,
                 hand_prior_weight, jaw_prior_weight, expression_prior_weight,
                 focal, cam_t, center):
    f32 = jnp.float32
    B, J, _ = joints.shape
    cam_t = jnp.asarray(cam_t, f32)
    center = jnp.asarray(center, f32)

    # ---- joint-space pre-fold (camera folded into the pack) ---------------
    a = (focal * (joints[..., :2] + cam_t[:2])).astype(f32)        # (B, J, 2)
    az = (joints[..., 2] + cam_t[2]).astype(f32)                   # (B, J)
    gtp = (gt_joints - center).astype(f32)                         # (B, J, 2)
    w2 = ((joint_weights * joint_conf * data_weight) ** 2).astype(f32)  # (B, J)

    def pack_xy(t):   # (B, J, 2) -> (B*2J,) as [x(J) | y(J)] per batch
        return jnp.concatenate([t[..., 0], t[..., 1]], axis=-1).reshape(-1)

    def dup(t):       # (B, J) -> (B*2J,) duplicated across the x/y halves
        return jnp.concatenate([t, t], axis=-1).reshape(-1)

    row_a, row_az = pack_xy(a), dup(az)
    row_gt, row_w2 = pack_xy(gtp), dup(w2)

    # ---- packed, pre-weighted L2 priors -----------------------------------
    priors = jnp.concatenate([
        betas * shape_weight,
        left_hand_pose * hand_prior_weight,
        right_hand_pose * hand_prior_weight,
        jaw_pose * jaw_prior_weight,
        expression * expression_prior_weight,
    ], axis=-1).reshape(-1).astype(f32)

    # ---- bending prior angles (weight folded as 0.5*log(w)) ---------------
    # body_pose indices [52, 55, 9, 12] -> full_pose cols [55, 58, 12, 15].
    signs = jnp.array([1.0, -1.0, -1.0, -1.0], f32)
    ang = (full_pose[:, jnp.array([55, 58, 12, 15])] * signs).astype(f32)
    if bending_prior_weight > 0.0:
        ang = ang + f32(0.5 * math.log(bending_prior_weight))
    else:
        ang = jnp.full_like(ang, -100.0)       # exp(2*(-100)) == 0 exactly
    ang = ang.reshape(-1)

    # ---- single lane-dense (8, L) buffer -----------------------------------
    n_max = max(row_a.shape[0], priors.shape[0], ang.shape[0])
    L = 128 * max(1, -(-n_max // 128))

    def pad_to(v, fill):
        return jnp.pad(v, (0, L - v.shape[0]), constant_values=f32(fill))

    buf = jnp.stack([
        pad_to(row_a, 0.0),
        pad_to(row_az, 1.0),      # avoids recip(0) in padded lanes
        pad_to(row_gt, 0.0),
        pad_to(row_w2, 0.0),      # masks padded joint contributions
        pad_to(priors, 0.0),
        pad_to(ang, -100.0),      # exp underflows to 0 in padded lanes
        jnp.zeros((L,), f32),
        jnp.zeros((L,), f32),
    ], axis=0)                    # (8, L), L == 128 at toy sizes -> one vreg

    out = pl.pallas_call(
        _make_kernel(rho),
        out_shape=jax.ShapeDtypeStruct((1, 1), f32),
        in_specs=[pl.BlockSpec(memory_space=pltpu.MemorySpace.VMEM)],
        out_specs=pl.BlockSpec(memory_space=pltpu.MemorySpace.SMEM),
    )(buf)
    return out[0, 0]


def _reference_loss(joints, gt_joints, joint_conf, joint_weights,
                    betas, full_pose, left_hand_pose, right_hand_pose,
                    jaw_pose, expression, *,
                    rho, data_weight, shape_weight, bending_prior_weight,
                    hand_prior_weight, jaw_prior_weight,
                    expression_prior_weight, focal, cam_t, center):
    """Pure-JAX mirror of the PyTorch forward (same synthetic priors/camera)."""
    cam = joints + jnp.asarray(cam_t)[None, None, :]
    proj = focal * cam[..., :2] / cam[..., 2:3] + jnp.asarray(center)[None, None, :]
    w = (joint_weights * joint_conf)[..., None]
    sq = (gt_joints - proj) ** 2
    dist = sq / (sq + rho) * rho
    joint_loss = jnp.sum(w ** 2 * dist) * data_weight ** 2
    shape_loss = jnp.sum(betas ** 2) * shape_weight ** 2
    body_pose = full_pose[:, 3:66]
    signs = jnp.array([1.0, -1.0, -1.0, -1.0])
    angle = jnp.exp(body_pose[:, jnp.array([52, 55, 9, 12])] * signs) ** 2
    angle_loss = jnp.sum(angle) * bending_prior_weight
    lh = jnp.sum(left_hand_pose ** 2) * hand_prior_weight ** 2
    rh = jnp.sum(right_hand_pose ** 2) * hand_prior_weight ** 2
    jl = jnp.sum((jaw_pose * jaw_prior_weight) ** 2)
    el = jnp.sum(expression ** 2) * expression_prior_weight ** 2
    return joint_loss + shape_loss + angle_loss + lh + rh + jl + el


if __name__ == "__main__":
    key = jax.random.PRNGKey(0)
    ks = jax.random.split(key, 10)

    B, J = 2, 16          # batch, num joints
    NB, P = 10, 72        # betas, full pose
    NH, NE = 12, 10       # hand pose, expression

    joints = jax.random.normal(ks[0], (B, J, 3), jnp.float32) * 0.5
    gt_joints = jax.random.normal(ks[1], (B, J, 2), jnp.float32) * 50.0 + 500.0
    joint_conf = jax.random.uniform(ks[2], (B, J), jnp.float32)
    joint_weights = jax.random.uniform(ks[3], (B, J), jnp.float32) + 0.5
    betas = jax.random.normal(ks[4], (B, NB), jnp.float32)
    full_pose = jax.random.normal(ks[5], (B, P), jnp.float32) * 0.3
    left_hand_pose = jax.random.normal(ks[6], (B, NH), jnp.float32) * 0.2
    right_hand_pose = jax.random.normal(ks[7], (B, NH), jnp.float32) * 0.2
    jaw_pose = jax.random.normal(ks[8], (B, 3), jnp.float32) * 0.1
    expression = jax.random.normal(ks[9], (B, NE), jnp.float32)

    cfg = dict(rho=100.0, data_weight=1.0, shape_weight=0.5,
               bending_prior_weight=0.3, hand_prior_weight=0.4,
               jaw_prior_weight=0.7, expression_prior_weight=0.6,
               focal=500.0, cam_t=(0.1, -0.05, 5.0), center=(480.0, 512.0))

    loss = smplify_loss(joints, gt_joints, joint_conf, joint_weights,
                        betas, full_pose, left_hand_pose, right_hand_pose,
                        jaw_pose, expression, **cfg)
    loss = jax.block_until_ready(loss)

    ref = _reference_loss(joints, gt_joints, joint_conf, joint_weights,
                          betas, full_pose, left_hand_pose, right_hand_pose,
                          jaw_pose, expression, **cfg)
    # Approx reciprocal in the GMoF denominator + different reduction order
    # vs. the pure-JAX reference.
    assert jnp.allclose(loss, ref, rtol=1e-3, atol=1e-2), (loss, ref)

    print("KERNEL_OK")
</pallas_src>

<mosaic_0001>
module attributes {stable_mosaic.version = 11 : i64} {
  func.func @_kernel(%arg0: memref<8x128xf32, #tpu.memory_space<vmem>>, %arg1: memref<1x1xf32, #tpu.memory_space<smem>>) attributes {dimension_semantics = [], scalar_prefetch = 0 : i64, scratch_operands = 0 : i64, tpu.core_type = #tpu.core_type<tc>} {
    %c0 = arith.constant 0 : index
    %c0_0 = arith.constant 0 : index
    %0 = vector.load %arg0[%c0, %c0_0] : memref<8x128xf32, #tpu.memory_space<vmem>>, vector<8x128xf32>
    %1 = vector.extract_strided_slice %0 {offsets = [0, 0], sizes = [1, 128], strides = [1, 1]} : vector<8x128xf32> to vector<1x128xf32>
    %2 = vector.extract_strided_slice %0 {offsets = [1, 0], sizes = [1, 128], strides = [1, 1]} : vector<8x128xf32> to vector<1x128xf32>
    %3 = vector.extract_strided_slice %0 {offsets = [2, 0], sizes = [1, 128], strides = [1, 1]} : vector<8x128xf32> to vector<1x128xf32>
    %4 = vector.extract_strided_slice %0 {offsets = [3, 0], sizes = [1, 128], strides = [1, 1]} : vector<8x128xf32> to vector<1x128xf32>
    %5 = vector.extract_strided_slice %0 {offsets = [4, 0], sizes = [1, 128], strides = [1, 1]} : vector<8x128xf32> to vector<1x128xf32>
    %6 = vector.extract_strided_slice %0 {offsets = [5, 0], sizes = [1, 128], strides = [1, 1]} : vector<8x128xf32> to vector<1x128xf32>
    %7 = tpu.reciprocal %2 {approx = true} : vector<1x128xf32> -> vector<1x128xf32>
    %8 = arith.mulf %2, %7 : vector<1x128xf32>
    %cst = arith.constant 2.000000e+00 : f32
    %9 = vector.broadcast %cst : f32 to vector<1x128xf32>
    %10 = arith.subf %9, %8 : vector<1x128xf32>
    %11 = arith.mulf %7, %10 : vector<1x128xf32>
    %12 = arith.mulf %1, %11 : vector<1x128xf32>
    %13 = arith.subf %3, %12 : vector<1x128xf32>
    %14 = arith.mulf %13, %13 : vector<1x128xf32>
    %cst_1 = arith.constant 1.000000e+02 : f32
    %15 = vector.broadcast %cst_1 : f32 to vector<1x128xf32>
    %16 = arith.mulf %15, %14 : vector<1x128xf32>
    %cst_2 = arith.constant 1.000000e+02 : f32
    %17 = vector.broadcast %cst_2 : f32 to vector<1x128xf32>
    %18 = arith.addf %14, %17 : vector<1x128xf32>
    %19 = tpu.reciprocal %18 {approx = true} : vector<1x128xf32> -> vector<1x128xf32>
    %20 = arith.mulf %16, %19 : vector<1x128xf32>
    %21 = arith.mulf %4, %20 : vector<1x128xf32>
    %22 = arith.mulf %5, %5 : vector<1x128xf32>
    %23 = arith.addf %21, %22 : vector<1x128xf32>
    %cst_3 = arith.constant 2.000000e+00 : f32
    %24 = vector.broadcast %cst_3 : f32 to vector<1x128xf32>
    %25 = arith.mulf %24, %6 : vector<1x128xf32>
    %26 = math.exp %25 : vector<1x128xf32>
    %27 = arith.addf %23, %26 : vector<1x128xf32>
    %28 = vector.shape_cast %27 : vector<1x128xf32> to vector<1x1x128xf32>
    %cst_4 = arith.constant dense<0.000000e+00> : vector<1xf32>
    %29 = vector.multi_reduction <add>, %28, %cst_4 [1, 2] : vector<1x1x128xf32> to vector<1xf32>
    %30 = vector.shape_cast %29 : vector<1xf32> to vector<1x1x1xf32>
    %31 = vector.extract %30[0, 0, 0] : f32 from vector<1x1x1xf32>
    %c0_5 = arith.constant 0 : index
    %c0_6 = arith.constant 0 : index
    %32 = memref.load %arg1[%c0_5, %c0_6] : memref<1x1xf32, #tpu.memory_space<smem>>
    memref.store %31, %arg1[%c0_5, %c0_6] : memref<1x1xf32, #tpu.memory_space<smem>>
    return
  }
}

</mosaic_0001>

<llo_original>
// kernel: tpu_custom_call.1
$region0: #{tpu_custom_call.1}
  #allocation0 [shape = 'u32[]', space=smem, size = 0x4, offset = 0x4, fixed_abs, tag = 'smem constant byte address 0x4 - core index']
  #allocation1 [shape = 'u32[144,128]{1,0:T(1,128)}', space=vmem, size = 0x12000, scoped, tag = 'internal scratch']
  %s0 = inlined_call_operand.hbm [shape: f32[8,128], index: 0, kind: input, shape index: {}]
  %s1 = inlined_call_operand.hbm [shape: f32[1,1], index: 1, kind: output, shape index: {}]
  %s2 = sld [smem:[#allocation0]]
  $region18: #{tpu_custom_call.1} parent=0
    _
  %s4 = ssub.s32 1, %s2
  %s5 = scalar_select 0, %s4, %s2
  $region1: #{tpu_custom_call.1} parent=0
    #allocation2 [shape = 'u8[4096]{0}', space=vmem, size = 0x1000, scoped, tag = 'input window, operand 0, single buffered']
    #allocation3 [shape = 's32[1]{0}', space=sflag, size = 0x4, scoped, tag = 'scoped memory for tpu_custom_call.1']
    #allocation4 [shape = 's32[1]{0}', space=sflag, size = 0x4, scoped, tag = 'scoped memory for tpu_custom_call.1']
    #allocation5 [shape = 'u8[512]{0}', space=smem, size = 0x200, scoped, tag = 'output window, operand 0, single buffered']
    %6 = vsyncpa [#allocation3], 0
    %7 = vsyncpa [#allocation4], 0
    // Predicated region
    $region2: #{tpu_custom_call.1} parent=1 // pred_check
      _
    $region3: #{tpu_custom_call.1} parent=1 // pred_check_branch
      %9 = sbr.rel (0) target = $region5
    $region4: #{tpu_custom_call.1} parent=1 // pred_region
      %s11 = ssub.s32 128, 128
      %12 = vsyncadd [#allocation3], %s11
      %s14 = sshll.u32 [#allocation2], 4
      %s15 = int_to_ptr.vmem [resolvable:$true] %s14
      %17 = dma.hbm_to_vmem [thread:$0]  %s0, 128, %s15, [#allocation3]
    $region5: #{tpu_custom_call.1} parent=1 // pred_fallthru
      _
    // Predicated region
    $region6: #{tpu_custom_call.1} parent=1 // pred_check
      _
    $region7: #{tpu_custom_call.1} parent=1 // pred_check_branch
      %19 = sbr.rel (0) target = $region9
    $region8: #{tpu_custom_call.1} parent=1 // pred_region
      %20 = dma.done [#allocation3], 128
    $region9: #{tpu_custom_call.1} parent=1 // pred_fallthru
      _
    %v21 = vld [vmem:[#allocation2] sm:$0xff]
    %v22 = vrcp.pop %v21
    %v23 = vmul.f32 %v21, %v22
    %v24 = vsub.f32 2.0, %v23
    %v25 = vmul.f32 %v22, %v24
    %v27 = vrot.slane %v25, 1
    %v29 = vmul.f32 %v21, %v27
    %v31 = vrot.slane %v29, 6
    %v33 = vsub.f32 %v21, %v31
    %v34 = vmul.f32 %v33, %v33
    %v35 = vmul.f32 %v34, 100.0
    %v36 = vadd.f32 %v34, 100.0
    %v37 = vrcp.pop %v36
    %v38 = vmul.f32 %v35, %v37
    %v40 = vrot.slane %v38, 7
    %v42 = vmul.f32 %v21, %v40
    %v43 = vmul.f32 %v21, %v21
    %v45 = vrot.slane %v43, 1
    %v47 = vadd.f32 %v42, %v45
    %v48 = vmul.f32 %v21, 2.0
    %v49 = vmul.f32 %v48, 1.442695
    %v50 = vpow.pop %v49
    %v52 = vrot.slane %v50, 2
    %v54 = vadd.f32 %v47, %v52
    %v56 = vrot.slane %v54, 3
    %vm58 = vcmask 1040384
    %v59 = vsel %vm58, %v56, 0.0
    %60 = vadd.xlane.f32.xlu0 %v59
    %v61 = vpop.xlane.xlu0 %60
    %v62 = vrot.slane %v61, 4
    %v63 = vadd.f32 %v61, %v62
    %v64 = vrot.slane %v63, 2
    %v65 = vadd.f32 %v63, %v64
    %v66 = vrot.slane %v65, 1
    %v67 = vadd.f32 %v65, %v66
    %s68 = vtos %v67
    %s69 = scalar_lea.smem [#allocation5], 0
    %70 = sst [smem:[%s69]] %s68
    // Predicated region
    $region10: #{tpu_custom_call.1} parent=1 // pred_check
      _
    $region11: #{tpu_custom_call.1} parent=1 // pred_check_branch
      %72 = sbr.rel (0) target = $region13
    $region12: #{tpu_custom_call.1} parent=1 // pred_region
      %s74 = ssub.s32 16, 16
      %75 = vsyncadd [#allocation4], %s74
      %78 = dma.smem_to_hbm [#allocation5], 16, %s1, [#allocation4]
    $region13: #{tpu_custom_call.1} parent=1 // pred_fallthru
      _
    // Predicated region
    $region14: #{tpu_custom_call.1} parent=1 // pred_check
      _
    $region15: #{tpu_custom_call.1} parent=1 // pred_check_branch
      %80 = sbr.rel (0) target = $region17
    $region16: #{tpu_custom_call.1} parent=1 // pred_region
      %81 = dma.done [#allocation4], 16
    $region17: #{tpu_custom_call.1} parent=1 // pred_fallthru
      _
    %82 = sfence
    %83 = vsyncpa [#allocation3], 1
    %84 = vsyncpa [#allocation4], 1

</llo_original>
